<compile_context>
chip_gen: v7x
topology: tpu7x:2x2x1
jax: 0.10.0
libtpu: 0.0.40
codegen_flags: <defaults>
</compile_context>

<pallas_src>
import functools

import jax
import jax.numpy as jnp
from jax.experimental import pallas as pl
from jax.experimental.pallas import tpu as pltpu


# Defaults budgeted for v7x's 64 MiB VMEM/TC (~10 MiB double-buffered working
# set); also comfortably fit v5e/v6e.  N/K tiles are multiples of 256 for full
# 256x256 MXU occupancy on v6e/v7x.
_DEF_TM, _DEF_TN, _DEF_TK = 512, 1024, 512


def _round_up(x: int, m: int) -> int:
    return ((x + m - 1) // m) * m


# ---------------------------------------------------------------------------
# Kernel
# ---------------------------------------------------------------------------
def _linear_expert_kernel(x_ref, w_ref, b_ref, o_ref):
    """One (tm, tn) f32 output tile, accumulated in place over the K grid axis.

    The output tile doubles as the accumulator (no VMEM scratch): its BlockSpec
    returns the same (i, j) block for every k, so it is VMEM-resident across
    the reduction.  Bias initializes it at k == 0; every step is then a pure
    MXU matmul-accumulate with no epilogue pass.
    """
    @pl.when(pl.program_id(2) == 0)
    def _():
        o_ref[...] = jnp.broadcast_to(b_ref[...], o_ref.shape).astype(o_ref.dtype)

    o_ref[...] += jnp.dot(
        x_ref[...], w_ref[...], preferred_element_type=jnp.float32
    )


# ---------------------------------------------------------------------------
# One-time parameter preparation (load time, NOT per forward call)
# ---------------------------------------------------------------------------
def prepare_linear_expert_params(weight, bias, *, tn=_DEF_TN, tk=_DEF_TK,
                                 param_dtype=jnp.float32):
    """Convert PyTorch-convention params ONCE to the kernel layout.

    weight (O, I) -> transposed to (I, O) and zero-padded to (Kp, Np);
    bias (O,) -> (1, Np).  Padding at load time means the forward never does a
    weight-sized HBM read+write before the kernel.

    param_dtype=jnp.bfloat16 halves weight HBM traffic and runs the MXU at
    native bf16 rate on v6e/v7x (cast x to bf16 too; accumulation stays f32).
    """
    w_io = jnp.asarray(weight).astype(param_dtype).T           # (I, O)
    b2 = jnp.asarray(bias).astype(jnp.float32).reshape(1, -1)  # (1, O)
    I, O = w_io.shape
    tn_eff = min(tn, _round_up(O, 128))
    tk_eff = min(tk, _round_up(I, 128))
    Kp, Np = _round_up(I, tk_eff), _round_up(O, tn_eff)
    if (Kp, Np) != (I, O):
        w_io = jnp.pad(w_io, ((0, Kp - I), (0, Np - O)))
    if Np != O:
        b2 = jnp.pad(b2, ((0, 0), (0, Np - O)))
    return w_io, b2, (I, O)


# ---------------------------------------------------------------------------
# Forward
# ---------------------------------------------------------------------------
def linear_expert_forward(x, w_padded, bias_padded, logical_dims, *,
                          tm=_DEF_TM, tn=_DEF_TN, tk=_DEF_TK,
                          vmem_limit_bytes=64 << 20,
                          force_pallas=False):
    """Tiled Pallas forward for _LinearExpert: (B, I) -> (B, O).

    w_padded / bias_padded / logical_dims come from
    prepare_linear_expert_params (same tn/tk).
    """
    I, O = logical_dims
    B = x.shape[0]
    assert x.shape[1] == I
    Kp, Np = w_padded.shape

    # Small-shape fallback: launch + padding overhead dominates tiny experts.
    if not force_pallas and 2 * B * I * O < 1e7:
        y = jnp.dot(x, w_padded[:I, :O].astype(x.dtype),
                    preferred_element_type=jnp.float32)
        return (y + bias_padded[:, :O]).astype(x.dtype)

    # Clamp tiles to the (padded) problem; keep N/K tiles lane-dense (x128)
    # and the M tile sublane-aligned (x8 f32, x16 bf16 packing).
    sub = 16 if x.dtype == jnp.bfloat16 else 8
    tm = min(tm, _round_up(B, sub))
    tn = min(tn, Np)
    tk = min(tk, Kp)
    assert Np % tn == 0 and Kp % tk == 0, (
        "weight padding does not match the requested tiles; re-run "
        "prepare_linear_expert_params with the same tn/tk")

    Mp = _round_up(B, tm)

    # v7x megacore: ensure the (M, N) parallel grid has >= 2 tiles when the
    # shape allows it, so both TensorCores get work (no effect on v5e/v6e).
    if (Mp // tm) * (Np // tn) == 1:
        if tn >= 256:
            tn //= 2
        elif tm >= 2 * sub:
            tm //= 2
            Mp = _round_up(B, tm)

    # Only the activation is ever padded per call (weight pre-padded at load).
    xp = x if (Mp == B and Kp == I) else jnp.pad(x, ((0, Mp - B), (0, Kp - I)))

    grid = (Mp // tm, Np // tn, Kp // tk)

    out_padded = pl.pallas_call(
        _linear_expert_kernel,
        out_shape=jax.ShapeDtypeStruct((Mp, Np), jnp.float32),
        grid_spec=pltpu.PrefetchScalarGridSpec(
            num_scalar_prefetch=0,
            grid=grid,
            in_specs=[
                pl.BlockSpec((tm, tk), lambda i, j, k: (i, k)),   # x tile
                pl.BlockSpec((tk, tn), lambda i, j, k: (k, j)),   # W (I, O) tile
                pl.BlockSpec((1, tn), lambda i, j, k: (0, j)),    # bias (N only)
            ],
            out_specs=pl.BlockSpec((tm, tn), lambda i, j, k: (i, j)),
        ),
        compiler_params=pltpu.CompilerParams(
            dimension_semantics=("parallel", "parallel", "arbitrary"),
            vmem_limit_bytes=vmem_limit_bytes,
        ),
    )(xp, w_padded, bias_padded)

    out = out_padded
    if Mp != B or Np != O:
        out = out[:B, :O]
    return out.astype(x.dtype)


# ---------------------------------------------------------------------------
# Init (torch.nn.Linear defaults: uniform +/- 1/sqrt(fan_in))
# ---------------------------------------------------------------------------
def init_linear_expert_params(key, input_dimension, output_dimension):
    k_w, k_b = jax.random.split(key)
    bound = 1.0 / jnp.sqrt(jnp.float32(input_dimension))
    weight = jax.random.uniform(
        k_w, (output_dimension, input_dimension), jnp.float32, -bound, bound)
    bias = jax.random.uniform(
        k_b, (output_dimension,), jnp.float32, -bound, bound)
    return weight, bias


if __name__ == "__main__":
    # Small shapes consistent with the module: (B, I) -> (B, O)
    B, I, O = 2, 32, 16
    key = jax.random.PRNGKey(0)
    k_x, k_p = jax.random.split(key)

    x = jax.random.normal(k_x, (B, I), jnp.float32)
    weight, bias = init_linear_expert_params(k_p, I, O)   # PyTorch convention

    # One-time layout conversion + padding (no per-call weight work).
    w_p, b_p, dims = prepare_linear_expert_params(weight, bias)

    fwd = jax.jit(functools.partial(
        linear_expert_forward, logical_dims=dims, force_pallas=True))
    out = jax.block_until_ready(fwd(x, w_p, b_p))

    # Reference check (plain JAX) for correctness.
    ref = x @ weight.T + bias
    assert out.shape == (B, O)
    assert jnp.allclose(out, ref, atol=1e-5, rtol=1e-5)

    print("KERNEL_OK")
</pallas_src>

<mosaic_0001>
module attributes {stable_mosaic.version = 11 : i64} {
  func.func @_linear_expert_kernel(%arg0: i32, %arg1: i32, %arg2: i32, %arg3: memref<8x128xf32, #tpu.memory_space<vmem>>, %arg4: memref<128x128xf32, #tpu.memory_space<vmem>>, %arg5: memref<1x128xf32, #tpu.memory_space<vmem>>, %arg6: memref<8x128xf32, #tpu.memory_space<vmem>>) attributes {dimension_semantics = [#tpu.dimension_semantics<parallel>, #tpu.dimension_semantics<parallel>, #tpu.dimension_semantics<arbitrary>], iteration_bounds = array<i64: 1, 1, 1>, scalar_prefetch = 0 : i64, scratch_operands = 0 : i64, tpu.core_type = #tpu.core_type<tc>, window_params = [{transform_indices = @transform_0, window_bounds = array<i64: 8, 128>}, {transform_indices = @transform_1, window_bounds = array<i64: 128, 128>}, {transform_indices = @transform_2, window_bounds = array<i64: 1, 128>}, {transform_indices = @transform_3, window_bounds = array<i64: 8, 128>}]} {
    %c0_i32 = arith.constant 0 : i32
    %0 = arith.cmpi eq, %arg2, %c0_i32 : i32
    %1 = arith.extui %0 : i1 to i32
    %c0_i32_0 = arith.constant 0 : i32
    %2 = arith.cmpi ne, %1, %c0_i32_0 : i32
    scf.if %2 {
      %c0_8 = arith.constant 0 : index
      %c0_9 = arith.constant 0 : index
      %9 = vector.load %arg5[%c0_8, %c0_9] : memref<1x128xf32, #tpu.memory_space<vmem>>, vector<1x128xf32>
      %10 = vector.shape_cast %9 : vector<1x128xf32> to vector<1x128xf32>
      %11 = vector.broadcast %10 : vector<1x128xf32> to vector<8x128xf32>
      %c0_10 = arith.constant 0 : index
      %c0_11 = arith.constant 0 : index
      %12 = vector.load %arg6[%c0_10, %c0_11] : memref<8x128xf32, #tpu.memory_space<vmem>>, vector<8x128xf32>
      tpu.vector_store %arg6[%c0_10, %c0_11], %11 {strides = array<i32>} : memref<8x128xf32, #tpu.memory_space<vmem>>, vector<8x128xf32>,
    } else {
    }
    %c0 = arith.constant 0 : index
    %c0_1 = arith.constant 0 : index
    %3 = vector.load %arg6[%c0, %c0_1] : memref<8x128xf32, #tpu.memory_space<vmem>>, vector<8x128xf32>
    %c0_2 = arith.constant 0 : index
    %c0_3 = arith.constant 0 : index
    %4 = vector.load %arg3[%c0_2, %c0_3] : memref<8x128xf32, #tpu.memory_space<vmem>>, vector<8x128xf32>
    %c0_4 = arith.constant 0 : index
    %c0_5 = arith.constant 0 : index
    %5 = vector.load %arg4[%c0_4, %c0_5] : memref<128x128xf32, #tpu.memory_space<vmem>>, vector<128x128xf32>
    %cst = arith.constant dense<0.000000e+00> : vector<8x128xf32>
    %6 = tpu.matmul %4, %5, %cst {dimension_numbers = #tpu.dot_dimension_numbers<[1], [0], [0], [1], [0, 0, 1, 1], [], []>} : vector<8x128xf32>, vector<128x128xf32>, vector<8x128xf32> -> vector<8x128xf32>
    %7 = arith.addf %3, %6 : vector<8x128xf32>
    %c0_6 = arith.constant 0 : index
    %c0_7 = arith.constant 0 : index
    %8 = vector.load %arg6[%c0_6, %c0_7] : memref<8x128xf32, #tpu.memory_space<vmem>>, vector<8x128xf32>
    tpu.vector_store %arg6[%c0_6, %c0_7], %7 {strides = array<i32>} : memref<8x128xf32, #tpu.memory_space<vmem>>, vector<8x128xf32>,
    return
  }
  func.func @transform_0(%arg0: i32, %arg1: i32, %arg2: i32) -> (i32, i32) {
    %c0_i32 = arith.constant 0 : i32
    return %arg0, %arg2 : i32, i32
  }
  func.func @transform_1(%arg0: i32, %arg1: i32, %arg2: i32) -> (i32, i32) {
    %c0_i32 = arith.constant 0 : i32
    return %arg2, %arg1 : i32, i32
  }
  func.func @transform_2(%arg0: i32, %arg1: i32, %arg2: i32) -> (i32, i32) {
    %c0_i32 = arith.constant 0 : i32
    %c0_i32_0 = arith.constant 0 : i32
    return %c0_i32, %arg1 : i32, i32
  }
  func.func @transform_3(%arg0: i32, %arg1: i32, %arg2: i32) -> (i32, i32) {
    %c0_i32 = arith.constant 0 : i32
    return %arg0, %arg1 : i32, i32
  }
}

</mosaic_0001>

<llo_original>
// kernel: linear_expert_forward.1
$region0: #{linear_expert_forward.1}
  #allocation0 [shape = 'u32[]', space=smem, size = 0x4, offset = 0x4, fixed_abs, tag = 'smem constant byte address 0x4 - core index']
  #allocation1 [shape = 'u32[144,128]{1,0:T(1,128)}', space=vmem, size = 0x12000, scoped, tag = 'internal scratch']
  %s0 = inlined_call_operand.hbm [shape: f32[8,128], index: 0, kind: input, shape index: {}]
  %s1 = inlined_call_operand.hbm [shape: f32[128,128], index: 1, kind: input, shape index: {}]
  %s2 = inlined_call_operand.hbm [shape: f32[1,128], index: 2, kind: input, shape index: {}]
  %s3 = inlined_call_operand.hbm [shape: f32[8,128], index: 3, kind: output, shape index: {}]
  %s4 = sld [smem:[#allocation0]]
  $region38: #{linear_expert_forward.1} parent=0
    _
  %s6 = ssub.s32 1, %s4
  %s7 = scalar_select 0, %s6, %s4
  $region1: #{linear_expert_forward.1} parent=0
    #allocation2 [shape = 'u8[4096]{0}', space=vmem, size = 0x1000, scoped, tag = 'input window, operand 0, single buffered']
    #allocation3 [shape = 's32[1]{0}', space=sflag, size = 0x4, scoped, tag = 'scoped memory for linear_expert_forward.1']
    #allocation4 [shape = 's32[1]{0}', space=sflag, size = 0x4, scoped, tag = 'scoped memory for linear_expert_forward.1']
    #allocation5 [shape = 'u8[65536]{0}', space=vmem, size = 0x10000, scoped, tag = 'input window, operand 1, single buffered']
    #allocation6 [shape = 's32[1]{0}', space=sflag, size = 0x4, scoped, tag = 'scoped memory for linear_expert_forward.1']
    #allocation7 [shape = 'u8[512]{0}', space=vmem, size = 0x400, scoped, tag = 'input window, operand 2, single buffered']
    #allocation8 [shape = 'u8[4096]{0}', space=vmem, size = 0x1000, scoped, tag = 'output window, operand 0, single buffered']
    %8 = vsyncpa [#allocation3], 0
    %9 = vsyncpa [#allocation6], 0
    %10 = vsyncpa [#allocation4], 0
    // Predicated region
    $region2: #{linear_expert_forward.1} parent=1 // pred_check
      _
    $region3: #{linear_expert_forward.1} parent=1 // pred_check_branch
      %12 = sbr.rel (0) target = $region5
    $region4: #{linear_expert_forward.1} parent=1 // pred_region
      %s14 = ssub.s32 128, 128
      %15 = vsyncadd [#allocation3], %s14
      %s17 = sshll.u32 [#allocation2], 4
      %s18 = int_to_ptr.vmem [resolvable:$true] %s17
      %20 = dma.hbm_to_vmem [thread:$0]  %s0, 128, %s18, [#allocation3]
    $region5: #{linear_expert_forward.1} parent=1 // pred_fallthru
      _
    // Predicated region
    $region6: #{linear_expert_forward.1} parent=1 // pred_check
      _
    $region7: #{linear_expert_forward.1} parent=1 // pred_check_branch
      %22 = sbr.rel (0) target = $region9
    $region8: #{linear_expert_forward.1} parent=1 // pred_region
      %s24 = ssub.s32 2048, 2048
      %25 = vsyncadd [#allocation6], %s24
      %s26 = sshll.u32 [#allocation5], 4
      %s27 = int_to_ptr.vmem [resolvable:$true] %s26
      %32 = dma.hbm_to_vmem [thread:$0]  %s1, 2048, %s27, [#allocation6], 128, 128, 8
    $region9: #{linear_expert_forward.1} parent=1 // pred_fallthru
      _
    // Predicated region
    $region10: #{linear_expert_forward.1} parent=1 // pred_check
      _
    $region11: #{linear_expert_forward.1} parent=1 // pred_check_branch
      %34 = sbr.rel (0) target = $region13
    $region12: #{linear_expert_forward.1} parent=1 // pred_region
      %s36 = ssub.s32 16, 16
      %37 = vsyncadd [#allocation6], %s36
      %s39 = sshll.u32 [#allocation7], 4
      %s40 = int_to_ptr.vmem [resolvable:$true] %s39
      %42 = dma.hbm_to_vmem [thread:$0]  %s2, 16, %s40, [#allocation6]
    $region13: #{linear_expert_forward.1} parent=1 // pred_fallthru
      _
    // Predicated region
    $region14: #{linear_expert_forward.1} parent=1 // pred_check
      _
    $region15: #{linear_expert_forward.1} parent=1 // pred_check_branch
      %44 = sbr.rel (0) target = $region17
    $region16: #{linear_expert_forward.1} parent=1 // pred_region
      %45 = dma.done [#allocation3], 128
    $region17: #{linear_expert_forward.1} parent=1 // pred_fallthru
      _
    // Predicated region
    $region18: #{linear_expert_forward.1} parent=1 // pred_check
      _
    $region19: #{linear_expert_forward.1} parent=1 // pred_check_branch
      %47 = sbr.rel (0) target = $region21
    $region20: #{linear_expert_forward.1} parent=1 // pred_region
      %48 = dma.done [#allocation6], 2048
    $region21: #{linear_expert_forward.1} parent=1 // pred_fallthru
      _
    // Predicated region
    $region22: #{linear_expert_forward.1} parent=1 // pred_check
      _
    $region23: #{linear_expert_forward.1} parent=1 // pred_check_branch
      %50 = sbr.rel (0) target = $region25
    $region24: #{linear_expert_forward.1} parent=1 // pred_region
      %51 = dma.done [#allocation6], 16
    $region25: #{linear_expert_forward.1} parent=1 // pred_fallthru
      _
    %p52 = scmp.eq.s32.totalorder 0, 0
    // Predicated region
    $region26: #{linear_expert_forward.1} parent=1 // pred_check
      %p53 = pneg %p52
    $region27: #{linear_expert_forward.1} parent=1 // pred_check_branch
      %55 = sbr.rel (%p53) target = $region29
    $region28: #{linear_expert_forward.1} parent=1 // pred_region
      %v56 = vld [vmem:[#allocation7] sm:$0x1]
      %v58 = vlaneseq
      %v59 = vshrl.u32 %v58, 7
      %v60 = vsub.s32 0, %v59
      %v61 = vrot.slane %v56, %v60
      %63 = vst [vmem:[#allocation8] sm:$0xff] %v61
    $region29: #{linear_expert_forward.1} parent=1 // pred_fallthru
      _
    %v64 = vld [vmem:[#allocation8] sm:$0xff]
    %v65 = vld [vmem:[#allocation2] sm:$0xff]
    %v66 = vld [vmem:[#allocation5] sm:$0xff]
    %v67 = vld [vmem:[#allocation5 + $0x8] sm:$0xff]
    %v68 = vld [vmem:[#allocation5 + $0x10] sm:$0xff]
    %v69 = vld [vmem:[#allocation5 + $0x18] sm:$0xff]
    %v70 = vld [vmem:[#allocation5 + $0x20] sm:$0xff]
    %v71 = vld [vmem:[#allocation5 + $0x28] sm:$0xff]
    %v72 = vld [vmem:[#allocation5 + $0x30] sm:$0xff]
    %v73 = vld [vmem:[#allocation5 + $0x38] sm:$0xff]
    %v74 = vld [vmem:[#allocation5 + $0x40] sm:$0xff]
    %v75 = vld [vmem:[#allocation5 + $0x48] sm:$0xff]
    %v76 = vld [vmem:[#allocation5 + $0x50] sm:$0xff]
    %v77 = vld [vmem:[#allocation5 + $0x58] sm:$0xff]
    %v78 = vld [vmem:[#allocation5 + $0x60] sm:$0xff]
    %v79 = vld [vmem:[#allocation5 + $0x68] sm:$0xff]
    %v80 = vld [vmem:[#allocation5 + $0x70] sm:$0xff]
    %v81 = vld [vmem:[#allocation5 + $0x78] sm:$0xff]
    %82 = vmatprep.subr.mxu0 0.0
    %83 = vmatpush1.msra.mxu0 %v66
    %84 = vmatprep.subr.mxu0 0.0
    %85 = vmatpush1.msra.mxu0 %v67
    %86 = vmatprep.subr.mxu0 0.0
    %87 = vmatpush1.msra.mxu0 %v68
    %88 = vmatprep.subr.mxu0 0.0
    %89 = vmatpush1.msra.mxu0 %v69
    %90 = vmatprep.subr.mxu0 0.0
    %91 = vmatpush1.msra.mxu0 %v70
    %92 = vmatprep.subr.mxu0 0.0
    %93 = vmatpush1.msra.mxu0 %v71
    %94 = vmatprep.subr.mxu0 0.0
    %95 = vmatpush1.msra.mxu0 %v72
    %96 = vmatprep.subr.mxu0 0.0
    %97 = vmatpush1.msra.mxu0 %v73
    %98 = vmatprep.subr.mxu0 0.0
    %99 = vmatpush1.msra.mxu0 %v74
    %100 = vmatprep.subr.mxu0 0.0
    %101 = vmatpush1.msra.mxu0 %v75
    %102 = vmatprep.subr.mxu0 0.0
    %103 = vmatpush1.msra.mxu0 %v76
    %104 = vmatprep.subr.mxu0 0.0
    %105 = vmatpush1.msra.mxu0 %v77
    %106 = vmatprep.subr.mxu0 0.0
    %107 = vmatpush1.msra.mxu0 %v78
    %108 = vmatprep.subr.mxu0 0.0
    %109 = vmatpush1.msra.mxu0 %v79
    %110 = vmatprep.subr.mxu0 0.0
    %111 = vmatpush1.msra.mxu0 %v80
    %112 = vmatprep.subr.mxu0 0.0
    %113 = vmatpush1.msra.mxu0 %v81
    %114 = vmatprep.subr.mxu0 0.0
    %115 = vmatpush1.msra.mxu0 0.0
    %116 = vmatprep.subr.mxu0 0.0
    %117 = vmatpush1.msra.mxu0 0.0
    %118 = vmatprep.subr.mxu0 0.0
    %119 = vmatpush1.msra.mxu0 0.0
    %120 = vmatprep.subr.mxu0 0.0
    %121 = vmatpush1.msra.mxu0 0.0
    %122 = vmatprep.subr.mxu0 0.0
    %123 = vmatpush1.msra.mxu0 0.0
    %124 = vmatprep.subr.mxu0 0.0
    %125 = vmatpush1.msra.mxu0 0.0
    %126 = vmatprep.subr.mxu0 0.0
    %127 = vmatpush1.msra.mxu0 0.0
    %128 = vmatprep.subr.mxu0 0.0
    %129 = vmatpush1.msra.mxu0 0.0
    %130 = vmatprep.subr.mxu0 0.0
    %131 = vmatpush1.msra.mxu0 0.0
    %132 = vmatprep.subr.mxu0 0.0
    %133 = vmatpush1.msra.mxu0 0.0
    %134 = vmatprep.subr.mxu0 0.0
    %135 = vmatpush1.msra.mxu0 0.0
    %136 = vmatprep.subr.mxu0 0.0
    %137 = vmatpush1.msra.mxu0 0.0
    %138 = vmatprep.subr.mxu0 0.0
    %139 = vmatpush1.msra.mxu0 0.0
    %140 = vmatprep.subr.mxu0 0.0
    %141 = vmatpush1.msra.mxu0 0.0
    %142 = vmatprep.subr.mxu0 0.0
    %143 = vmatpush1.msra.mxu0 0.0
    %144 = vmatprep.subr.mxu0 0.0
    %145 = vmatpush1.msra.mxu0 0.0
    %146 = vmatprep.mubr.f32.mxu0 0.0
    %147 = vmatmul.mubr.f32.gmra.mrb[0].mxu0 %v65
    %v148 = vpop.f32.mrb[0].mxu0
    %v149 = vadd.f32 0.0, %v148
    %v150 = vpop.f32.mrb[0].mxu0
    %151 = vdwg.mxu0
    %v152 = vadd.f32 %v64, %v149
    %153 = vst [vmem:[#allocation8] sm:$0xff] %v152
    // Predicated region
    $region30: #{linear_expert_forward.1} parent=1 // pred_check
      _
    $region31: #{linear_expert_forward.1} parent=1 // pred_check_branch
      %155 = sbr.rel (0) target = $region33
    $region32: #{linear_expert_forward.1} parent=1 // pred_region
      %s157 = ssub.s32 128, 128
      %158 = vsyncadd [#allocation4], %s157
      %s160 = sshll.u32 [#allocation8], 4
      %s161 = int_to_ptr.vmem [resolvable:$true] %s160
      %163 = dma.vmem_to_hbm [thread:$0]  %s161, 128, %s3, [#allocation4]
    $region33: #{linear_expert_forward.1} parent=1 // pred_fallthru
      _
    // Predicated region
    $region34: #{linear_expert_forward.1} parent=1 // pred_check
      _
    $region35: #{linear_expert_forward.1} parent=1 // pred_check_branch
      %165 = sbr.rel (0) target = $region37
    $region36: #{linear_expert_forward.1} parent=1 // pred_region
      %166 = dma.done [#allocation4], 128
    $region37: #{linear_expert_forward.1} parent=1 // pred_fallthru
      _
    %167 = vsyncpa [#allocation3], 1
    %168 = vsyncpa [#allocation6], 1
    %169 = vsyncpa [#allocation4], 1

</llo_original>
